<compile_context>
chip_gen: v7x
topology: tpu7x:2x2x1
jax: 0.10.0
libtpu: 0.0.40
codegen_flags: <defaults>
</compile_context>

<pallas_src>
import jax
import jax.numpy as jnp
from jax.experimental import pallas as pl
from jax.experimental.pallas import tpu as pltpu


def _round_up(x, m):
    return ((x + m - 1) // m) * m


def res_mlp_kernel(x_ref, wf_ref, b1_ref, w2_ref, b2_ref, w3_ref, b3_ref, o_ref):
    # One batch tile per grid step; weights/biases are grid-invariant (constant
    # index_maps) so they stay resident in VMEM.  bf16 MXU operands, f32 accum.
    d1 = b1_ref.shape[-1]                      # 128

    x = x_ref[...]                             # (TB, 256) bf16 — streamed as bf16

    # Fused block0 + skip projection: one matmul against Wf = [W1 | Wp].
    t = jnp.dot(x, wf_ref[...], preferred_element_type=jnp.float32)   # (TB, 160) f32
    h = jnp.maximum(t[:, :d1] + b1_ref[...], 0.0)     # block0: Linear(256->128)+ReLU
    skip = t[:, d1:]                                   # x @ Wp (bias=False), f32

    # block1: Linear(128 -> 32, bias) + ReLU
    h = jnp.dot(h.astype(jnp.bfloat16), w2_ref[...],
                preferred_element_type=jnp.float32) + b2_ref[...]
    h = jnp.maximum(h, 0.0)

    # block2: Linear(32 -> 32, bias)  + residual skip(0, 2)
    out = jnp.dot(h.astype(jnp.bfloat16), w3_ref[...],
                  preferred_element_type=jnp.float32) + skip + b3_ref[...]

    o_ref[...] = out.astype(o_ref.dtype)


def prepare_params(raw_params):
    """Offline parameter prep: fold the skip projection Wp into the first weight
    matrix (Wf = [W1 | Wp], so both output slices start at 128-aligned lane
    offsets) and cast weight matrices to bf16.  Biases stay f32."""
    w1, b1, w2, b2, w3, b3, wp = raw_params
    wf = jnp.concatenate([w1, wp], axis=1)              # (256, 128 + 32)
    return (wf.astype(jnp.bfloat16), b1,
            w2.astype(jnp.bfloat16), b2,
            w3.astype(jnp.bfloat16), b3)


def res_mlp_forward(x, params, *, batch_tile=2048):
    """x: [B, C, H, W] or pre-flattened [B, D]; ideally already bf16 (the
    producer layer should emit bf16 — the cast below only triggers if it did
    not).  Returns [B, layer_sizes[-1]] in f32."""
    if x.ndim > 2:
        x = x.reshape(x.shape[0], -1)          # nn.Flatten(): row-major C,H,W
    if x.dtype != jnp.bfloat16:
        x = x.astype(jnp.bfloat16)             # prefer producer-side bf16
    B, D = x.shape

    wf, b1, w2, b2, w3, b3 = params
    d1 = b1.shape[-1]
    d3 = w3.shape[-1]
    assert wf.shape == (D, d1 + d3)
    assert w2.shape == (d1, w3.shape[0])

    # Batch tile: multiple of 8 sublanes; keep >= 2 grid steps whenever B > 8
    # so the "parallel" batch axis shards across both v7x TensorCores.  Tiny
    # batches use a single full-array block.  The ragged last tile (B % tb != 0)
    # is handled by Pallas (row-independent compute, OOB writes dropped), so no
    # wrapper-side pad/slice copies.
    if B <= 8:
        tb = B
    else:
        tb = min(batch_tile, _round_up((B + 1) // 2, 8))
    grid = (pl.cdiv(B, tb),)

    def const_spec(arr):                        # weights: grid-invariant block
        return pl.BlockSpec(arr.shape, lambda i: (0, 0))

    out = pl.pallas_call(
        res_mlp_kernel,
        out_shape=jax.ShapeDtypeStruct((B, d3), jnp.float32),
        grid=grid,
        in_specs=[
            pl.BlockSpec((tb, D), lambda i: (i, 0)),    # x: tiled over batch
            const_spec(wf), const_spec(b1),
            const_spec(w2), const_spec(b2),
            const_spec(w3), const_spec(b3),
        ],
        out_specs=pl.BlockSpec((tb, d3), lambda i: (i, 0)),
        compiler_params=pltpu.CompilerParams(
            # batch rows are independent -> shard grid across TCs on v7x.
            dimension_semantics=("parallel",)),
    )(x, wf, b1, w2, b2, w3, b3)

    return out


def init_params(key, layer_sizes):
    """Deterministic synthetic f32 parameters (shapes match the PyTorch module).
    Linear weights stored as [in_features, out_features]; biases as [1, out]."""
    assert layer_sizes == [256, 128, 32, 32]
    ks = jax.random.split(key, 7)
    d0, d1, d2, d3 = layer_sizes

    def lin(k, fan_in, fan_out):
        bound = 1.0 / jnp.sqrt(fan_in)
        return jax.random.uniform(k, (fan_in, fan_out), jnp.float32,
                                  minval=-bound, maxval=bound)

    w1 = lin(ks[0], d0, d1)
    b1 = jax.random.uniform(ks[1], (1, d1), jnp.float32,
                            minval=-1.0 / jnp.sqrt(d0), maxval=1.0 / jnp.sqrt(d0))
    w2 = lin(ks[2], d1, d2)
    b2 = jax.random.uniform(ks[3], (1, d2), jnp.float32,
                            minval=-1.0 / jnp.sqrt(d1), maxval=1.0 / jnp.sqrt(d1))
    w3 = lin(ks[4], d2, d3)
    b3 = jax.random.uniform(ks[5], (1, d3), jnp.float32,
                            minval=-1.0 / jnp.sqrt(d2), maxval=1.0 / jnp.sqrt(d2))
    wp = lin(ks[6], d0, d2)   # skip (0,2) projection: Linear(d0, d2, bias=False)
    return (w1, b1, w2, b2, w3, b3, wp)


def res_mlp_reference_matched(x_flat_bf16, params):
    """Pure-JAX reference using the kernel's exact numeric recipe (bf16 operands,
    f32 accumulation) — validates the Pallas lowering itself."""
    wf, b1, w2, b2, w3, b3 = params
    d1 = b1.shape[-1]
    t = jnp.dot(x_flat_bf16, wf, preferred_element_type=jnp.float32)
    h = jnp.maximum(t[:, :d1] + b1, 0.0)
    skip = t[:, d1:]
    h = jnp.maximum(jnp.dot(h.astype(jnp.bfloat16), w2,
                            preferred_element_type=jnp.float32) + b2, 0.0)
    return jnp.dot(h.astype(jnp.bfloat16), w3,
                   preferred_element_type=jnp.float32) + skip + b3


def res_mlp_reference_f32(x_nchw, raw_params):
    """Pure-f32 reference mirroring the true PyTorch ResMLP.forward (no bf16
    rounding anywhere) — fidelity check with a documented tolerance."""
    w1, b1, w2, b2, w3, b3, wp = raw_params
    x = x_nchw.reshape(x_nchw.shape[0], -1).astype(jnp.float32)
    h = jnp.maximum(x @ w1 + b1, 0.0)
    h = jnp.maximum(h @ w2 + b2, 0.0)
    return h @ w3 + b3 + x @ wp


if __name__ == "__main__":
    key = jax.random.PRNGKey(0)
    kx, kp = jax.random.split(key)

    # NCHW [2, 4, 8, 8] -> flattened feature dim 256 = layer_sizes[0].
    x = jax.random.normal(kx, (2, 4, 8, 8), dtype=jnp.float32)
    layer_sizes = [256, 128, 32, 32]
    raw_params = init_params(kp, layer_sizes)
    params = prepare_params(raw_params)

    # Producer boundary: flatten + emit bf16 once (stands in for the upstream
    # layer producing bf16 activations directly, per the perf review).
    x_flat = x.reshape(x.shape[0], -1).astype(jnp.bfloat16)

    out = res_mlp_forward(x_flat, params)
    out = jax.block_until_ready(out)
    assert out.shape == (2, layer_sizes[-1])

    # (1) Exact-path check: same bf16-operand / f32-accumulate recipe as kernel.
    ref_m = res_mlp_reference_matched(x_flat, params)
    assert jnp.allclose(out, ref_m, atol=5e-3, rtol=5e-3), \
        float(jnp.max(jnp.abs(out - ref_m)))

    # (2) Fidelity check vs. the pure-f32 PyTorch-equivalent forward.
    #     bf16 x / bf16 weights over a 256-wide reduction give ~1e-3..1e-2
    #     absolute error, hence the looser documented tolerance here.
    ref_f = res_mlp_reference_f32(x, raw_params)
    assert jnp.allclose(out, ref_f, atol=5e-2, rtol=5e-2), \
        float(jnp.max(jnp.abs(out - ref_f)))

    print("KERNEL_OK")
</pallas_src>

<mosaic_0001>
module attributes {stable_mosaic.version = 11 : i64} {
  func.func @res_mlp_kernel(%arg0: i32, %arg1: memref<2x256xbf16, #tpu.memory_space<vmem>>, %arg2: memref<256x160xbf16, #tpu.memory_space<vmem>>, %arg3: memref<1x128xf32, #tpu.memory_space<vmem>>, %arg4: memref<128x32xbf16, #tpu.memory_space<vmem>>, %arg5: memref<1x32xf32, #tpu.memory_space<vmem>>, %arg6: memref<32x32xbf16, #tpu.memory_space<vmem>>, %arg7: memref<1x32xf32, #tpu.memory_space<vmem>>, %arg8: memref<2x32xf32, #tpu.memory_space<vmem>>) attributes {dimension_semantics = [#tpu.dimension_semantics<parallel>], iteration_bounds = array<i64: 1>, scalar_prefetch = 0 : i64, scratch_operands = 0 : i64, tpu.core_type = #tpu.core_type<tc>, window_params = [{transform_indices = @transform_0, window_bounds = array<i64: 2, 256>}, {pipeline_mode = #tpu.pipeline_mode<synchronous>, transform_indices = @transform_1, window_bounds = array<i64: 256, 160>}, {pipeline_mode = #tpu.pipeline_mode<synchronous>, transform_indices = @transform_2, window_bounds = array<i64: 1, 128>}, {pipeline_mode = #tpu.pipeline_mode<synchronous>, transform_indices = @transform_3, window_bounds = array<i64: 128, 32>}, {pipeline_mode = #tpu.pipeline_mode<synchronous>, transform_indices = @transform_4, window_bounds = array<i64: 1, 32>}, {pipeline_mode = #tpu.pipeline_mode<synchronous>, transform_indices = @transform_5, window_bounds = array<i64: 32, 32>}, {pipeline_mode = #tpu.pipeline_mode<synchronous>, transform_indices = @transform_6, window_bounds = array<i64: 1, 32>}, {transform_indices = @transform_7, window_bounds = array<i64: 2, 32>}]} {
    %c0 = arith.constant 0 : index
    %c0_0 = arith.constant 0 : index
    %0 = vector.load %arg1[%c0, %c0_0] : memref<2x256xbf16, #tpu.memory_space<vmem>>, vector<2x256xbf16>
    %c0_1 = arith.constant 0 : index
    %c0_2 = arith.constant 0 : index
    %1 = vector.load %arg2[%c0_1, %c0_2] : memref<256x160xbf16, #tpu.memory_space<vmem>>, vector<256x160xbf16>
    %cst = arith.constant dense<0.000000e+00> : vector<2x160xf32>
    %2 = tpu.matmul %0, %1, %cst {dimension_numbers = #tpu.dot_dimension_numbers<[1], [0], [0], [1], [0, 0, 1, 1], [], []>} : vector<2x256xbf16>, vector<256x160xbf16>, vector<2x160xf32> -> vector<2x160xf32>
    %3 = vector.extract_strided_slice %2 {offsets = [0, 0], sizes = [2, 128], strides = [1, 1]} : vector<2x160xf32> to vector<2x128xf32>
    %c0_3 = arith.constant 0 : index
    %c0_4 = arith.constant 0 : index
    %4 = vector.load %arg3[%c0_3, %c0_4] : memref<1x128xf32, #tpu.memory_space<vmem>>, vector<1x128xf32>
    %5 = vector.broadcast %4 : vector<1x128xf32> to vector<2x128xf32>
    %6 = arith.addf %3, %5 : vector<2x128xf32>
    %cst_5 = arith.constant 0.000000e+00 : f32
    %7 = vector.broadcast %cst_5 : f32 to vector<2x128xf32>
    %8 = arith.maximumf %6, %7 : vector<2x128xf32>
    %9 = vector.extract_strided_slice %2 {offsets = [0, 128], sizes = [2, 32], strides = [1, 1]} : vector<2x160xf32> to vector<2x32xf32>
    %10 = arith.truncf %8 : vector<2x128xf32> to vector<2x128xbf16>
    %c0_6 = arith.constant 0 : index
    %c0_7 = arith.constant 0 : index
    %11 = vector.load %arg4[%c0_6, %c0_7] : memref<128x32xbf16, #tpu.memory_space<vmem>>, vector<128x32xbf16>
    %cst_8 = arith.constant dense<0.000000e+00> : vector<2x32xf32>
    %12 = tpu.matmul %10, %11, %cst_8 {dimension_numbers = #tpu.dot_dimension_numbers<[1], [0], [0], [1], [0, 0, 1, 1], [], []>} : vector<2x128xbf16>, vector<128x32xbf16>, vector<2x32xf32> -> vector<2x32xf32>
    %c0_9 = arith.constant 0 : index
    %c0_10 = arith.constant 0 : index
    %13 = vector.load %arg5[%c0_9, %c0_10] : memref<1x32xf32, #tpu.memory_space<vmem>>, vector<1x32xf32>
    %14 = vector.broadcast %13 : vector<1x32xf32> to vector<2x32xf32>
    %15 = arith.addf %12, %14 : vector<2x32xf32>
    %cst_11 = arith.constant 0.000000e+00 : f32
    %16 = vector.broadcast %cst_11 : f32 to vector<2x32xf32>
    %17 = arith.maximumf %15, %16 : vector<2x32xf32>
    %18 = arith.truncf %17 : vector<2x32xf32> to vector<2x32xbf16>
    %c0_12 = arith.constant 0 : index
    %c0_13 = arith.constant 0 : index
    %19 = vector.load %arg6[%c0_12, %c0_13] : memref<32x32xbf16, #tpu.memory_space<vmem>>, vector<32x32xbf16>
    %cst_14 = arith.constant dense<0.000000e+00> : vector<2x32xf32>
    %20 = tpu.matmul %18, %19, %cst_14 {dimension_numbers = #tpu.dot_dimension_numbers<[1], [0], [0], [1], [0, 0, 1, 1], [], []>} : vector<2x32xbf16>, vector<32x32xbf16>, vector<2x32xf32> -> vector<2x32xf32>
    %21 = arith.addf %20, %9 : vector<2x32xf32>
    %c0_15 = arith.constant 0 : index
    %c0_16 = arith.constant 0 : index
    %22 = vector.load %arg7[%c0_15, %c0_16] : memref<1x32xf32, #tpu.memory_space<vmem>>, vector<1x32xf32>
    %23 = vector.broadcast %22 : vector<1x32xf32> to vector<2x32xf32>
    %24 = arith.addf %21, %23 : vector<2x32xf32>
    %c0_17 = arith.constant 0 : index
    %c0_18 = arith.constant 0 : index
    %25 = vector.load %arg8[%c0_17, %c0_18] : memref<2x32xf32, #tpu.memory_space<vmem>>, vector<2x32xf32>
    tpu.vector_store %arg8[%c0_17, %c0_18], %24 {strides = array<i32>} : memref<2x32xf32, #tpu.memory_space<vmem>>, vector<2x32xf32>,
    return
  }
  func.func @transform_0(%arg0: i32) -> (i32, i32) {
    %c0_i32 = arith.constant 0 : i32
    %c0_i32_0 = arith.constant 0 : i32
    return %arg0, %c0_i32 : i32, i32
  }
  func.func @transform_1(%arg0: i32) -> (i32, i32) {
    %c0_i32 = arith.constant 0 : i32
    %c0_i32_0 = arith.constant 0 : i32
    %c0_i32_1 = arith.constant 0 : i32
    return %c0_i32, %c0_i32_0 : i32, i32
  }
  func.func @transform_2(%arg0: i32) -> (i32, i32) {
    %c0_i32 = arith.constant 0 : i32
    %c0_i32_0 = arith.constant 0 : i32
    %c0_i32_1 = arith.constant 0 : i32
    return %c0_i32, %c0_i32_0 : i32, i32
  }
  func.func @transform_3(%arg0: i32) -> (i32, i32) {
    %c0_i32 = arith.constant 0 : i32
    %c0_i32_0 = arith.constant 0 : i32
    %c0_i32_1 = arith.constant 0 : i32
    return %c0_i32, %c0_i32_0 : i32, i32
  }
  func.func @transform_4(%arg0: i32) -> (i32, i32) {
    %c0_i32 = arith.constant 0 : i32
    %c0_i32_0 = arith.constant 0 : i32
    %c0_i32_1 = arith.constant 0 : i32
    return %c0_i32, %c0_i32_0 : i32, i32
  }
  func.func @transform_5(%arg0: i32) -> (i32, i32) {
    %c0_i32 = arith.constant 0 : i32
    %c0_i32_0 = arith.constant 0 : i32
    %c0_i32_1 = arith.constant 0 : i32
    return %c0_i32, %c0_i32_0 : i32, i32
  }
  func.func @transform_6(%arg0: i32) -> (i32, i32) {
    %c0_i32 = arith.constant 0 : i32
    %c0_i32_0 = arith.constant 0 : i32
    %c0_i32_1 = arith.constant 0 : i32
    return %c0_i32, %c0_i32_0 : i32, i32
  }
  func.func @transform_7(%arg0: i32) -> (i32, i32) {
    %c0_i32 = arith.constant 0 : i32
    %c0_i32_0 = arith.constant 0 : i32
    return %arg0, %c0_i32 : i32, i32
  }
}

</mosaic_0001>

<llo_original>
// kernel: tpu_custom_call.1
$region0: #{tpu_custom_call.1}
  #allocation0 [shape = 'u32[]', space=smem, size = 0x4, offset = 0x4, fixed_abs, tag = 'smem constant byte address 0x4 - core index']
  #allocation1 [shape = 'u32[144,128]{1,0:T(1,128)}', space=vmem, size = 0x12000, scoped, tag = 'internal scratch']
  %s0 = inlined_call_operand.vmem [shape: bf16[2,256], index: 0, kind: input, shape index: {}]
  %s1 = inlined_call_operand.vmem [shape: bf16[256,160], index: 1, kind: input, shape index: {}]
  %s2 = inlined_call_operand.vmem [shape: f32[1,128], index: 2, kind: input, shape index: {}]
  %s3 = inlined_call_operand.vmem [shape: bf16[128,32], index: 3, kind: input, shape index: {}]
  %s4 = inlined_call_operand.vmem [shape: f32[1,32], index: 4, kind: input, shape index: {}]
  %s5 = inlined_call_operand.vmem [shape: bf16[32,32], index: 5, kind: input, shape index: {}]
  %s6 = inlined_call_operand.vmem [shape: f32[1,32], index: 6, kind: input, shape index: {}]
  %s7 = inlined_call_operand.hbm [shape: f32[2,32], index: 7, kind: output, shape index: {}]
  %s8 = sld [smem:[#allocation0]]
  $region38: #{tpu_custom_call.1} parent=0
    _
  %s10 = ssub.s32 1, %s8
  %s11 = scalar_select 0, %s10, %s8
  $region1: #{tpu_custom_call.1} parent=0
    #allocation2 [shape = 'u8[1024]{0}', space=vmem, size = 0x400, scoped, tag = 'output window, operand 0, single buffered']
    #allocation3 [shape = 's32[1]{0}', space=sflag, size = 0x4, scoped, tag = 'scoped memory for tpu_custom_call.1']
    %12 = vsyncpa [#allocation3], 0
    // Predicated region
    $region2: #{tpu_custom_call.1} parent=1 // pred_check
      _
    $region3: #{tpu_custom_call.1} parent=1 // pred_check_branch
      %14 = sbr.rel (0) target = $region5
    $region4: #{tpu_custom_call.1} parent=1 // pred_region
      _
    $region5: #{tpu_custom_call.1} parent=1 // pred_fallthru
      _
    // Predicated region
    $region6: #{tpu_custom_call.1} parent=1 // pred_check
      _
    $region7: #{tpu_custom_call.1} parent=1 // pred_check_branch
      %16 = sbr.rel (0) target = $region9
    $region8: #{tpu_custom_call.1} parent=1 // pred_region
      _
    $region9: #{tpu_custom_call.1} parent=1 // pred_fallthru
      _
    // Predicated region
    $region10: #{tpu_custom_call.1} parent=1 // pred_check
      _
    $region11: #{tpu_custom_call.1} parent=1 // pred_check_branch
      %18 = sbr.rel (0) target = $region13
    $region12: #{tpu_custom_call.1} parent=1 // pred_region
      _
    $region13: #{tpu_custom_call.1} parent=1 // pred_fallthru
      _
    // Predicated region
    $region14: #{tpu_custom_call.1} parent=1 // pred_check
      _
    $region15: #{tpu_custom_call.1} parent=1 // pred_check_branch
      %20 = sbr.rel (0) target = $region17
    $region16: #{tpu_custom_call.1} parent=1 // pred_region
      _
    $region17: #{tpu_custom_call.1} parent=1 // pred_fallthru
      _
    // Predicated region
    $region18: #{tpu_custom_call.1} parent=1 // pred_check
      _
    $region19: #{tpu_custom_call.1} parent=1 // pred_check_branch
      %22 = sbr.rel (0) target = $region21
    $region20: #{tpu_custom_call.1} parent=1 // pred_region
      _
    $region21: #{tpu_custom_call.1} parent=1 // pred_fallthru
      _
    // Predicated region
    $region22: #{tpu_custom_call.1} parent=1 // pred_check
      _
    $region23: #{tpu_custom_call.1} parent=1 // pred_check_branch
      %24 = sbr.rel (0) target = $region25
    $region24: #{tpu_custom_call.1} parent=1 // pred_region
      _
    $region25: #{tpu_custom_call.1} parent=1 // pred_fallthru
      _
    // Predicated region
    $region26: #{tpu_custom_call.1} parent=1 // pred_check
      _
    $region27: #{tpu_custom_call.1} parent=1 // pred_check_branch
      %26 = sbr.rel (0) target = $region29
    $region28: #{tpu_custom_call.1} parent=1 // pred_region
      _
    $region29: #{tpu_custom_call.1} parent=1 // pred_fallthru
      _
    %v28 = vld [vmem:[%s0] sm:$0x3]
    %v29 = vld [vmem:[%s1] sm:$0xff]
    %v30 = vld [vmem:[%s1 + $0x8] sm:$0xff]
    %v31 = vld [vmem:[%s1 + $0x10] sm:$0xff]
    %v32 = vld [vmem:[%s1 + $0x18] sm:$0xff]
    %v33 = vld [vmem:[%s1 + $0x20] sm:$0xff]
    %v34 = vld [vmem:[%s1 + $0x28] sm:$0xff]
    %v35 = vld [vmem:[%s1 + $0x30] sm:$0xff]
    %v36 = vld [vmem:[%s1 + $0x38] sm:$0xff]
    %v37 = vld [vmem:[%s1 + $0x40] sm:$0xff]
    %v38 = vld [vmem:[%s1 + $0x48] sm:$0xff]
    %v39 = vld [vmem:[%s1 + $0x50] sm:$0xff]
    %v40 = vld [vmem:[%s1 + $0x58] sm:$0xff]
    %v41 = vld [vmem:[%s1 + $0x60] sm:$0xff]
    %v42 = vld [vmem:[%s1 + $0x68] sm:$0xff]
    %v43 = vld [vmem:[%s1 + $0x70] sm:$0xff]
    %v44 = vld [vmem:[%s1 + $0x78] sm:$0xff]
    %v45 = vld [vmem:[%s1 + $0x80] sm:$0xff]
    %v46 = vld [vmem:[%s1 + $0x88] sm:$0xff]
    %v47 = vld [vmem:[%s1 + $0x90] sm:$0xff]
    %v48 = vld [vmem:[%s1 + $0x98] sm:$0xff]
    %v49 = vld [vmem:[%s1 + $0xa0] sm:$0xff]
    %v50 = vld [vmem:[%s1 + $0xa8] sm:$0xff]
    %v51 = vld [vmem:[%s1 + $0xb0] sm:$0xff]
    %v52 = vld [vmem:[%s1 + $0xb8] sm:$0xff]
    %v53 = vld [vmem:[%s1 + $0xc0] sm:$0xff]
    %v54 = vld [vmem:[%s1 + $0xc8] sm:$0xff]
    %v55 = vld [vmem:[%s1 + $0xd0] sm:$0xff]
    %v56 = vld [vmem:[%s1 + $0xd8] sm:$0xff]
    %v57 = vld [vmem:[%s1 + $0xe0] sm:$0xff]
    %v58 = vld [vmem:[%s1 + $0xe8] sm:$0xff]
    %v59 = vld [vmem:[%s1 + $0xf0] sm:$0xff]
    %v60 = vld [vmem:[%s1 + $0xf8] sm:$0xff]
    %v63 = vunpack.c.l.s4 1966171168
    %v64 = vunpack.c.0.s8 %v63
    %v65 = vlaneseq
    %v66 = vshrl.u32 %v65, 7
    %v67 = vsub.s32 %v64, %v66
    %v68 = vrot.slane %v28, %v67
    %v69 = vcombine.high %v68, %v68
    %v71 = vunpack.c.l.s4 1966171168
    %v72 = vunpack.c.0.s8 %v71
    %v73 = vlaneseq
    %v74 = vshrl.u32 %v73, 7
    %v75 = vsub.s32 %v72, %v74
    %v76 = vrot.slane %v68, %v75
    %v78 = vunpack.c.l.s4 1966171168
    %v79 = vunpack.c.0.s8 %v78
    %v80 = vlaneseq
    %v81 = vshrl.u32 %v80, 7
    %v82 = vsub.s32 %v79, %v81
    %v83 = vrot.slane %v69, %v82
    %v118 = vunpack.c.l.b16 %v29
    %v119 = vunpack.c.h.b16 %v29
    %v120 = vunpack.c.l.b16 %v30
    %v121 = vunpack.c.h.b16 %v30
    %v122 = vunpack.c.l.b16 %v31
    %v123 = vunpack.c.h.b16 %v31
    %v124 = vunpack.c.l.b16 %v32
    %v125 = vunpack.c.h.b16 %v32
    %v126 = vunpack.c.l.b16 %v33
    %v127 = vunpack.c.h.b16 %v33
    %v128 = vunpack.c.l.b16 %v34
    %v129 = vunpack.c.h.b16 %v34
    %v130 = vunpack.c.l.b16 %v35
    %v131 = vunpack.c.h.b16 %v35
    %v132 = vunpack.c.l.b16 %v36
    %v133 = vunpack.c.h.b16 %v36
    %v134 = vunpack.c.l.b16 %v37
    %v135 = vunpack.c.h.b16 %v37
    %v136 = vunpack.c.l.b16 %v38
    %v137 = vunpack.c.h.b16 %v38
    %v138 = vunpack.c.l.b16 %v39
    %v139 = vunpack.c.h.b16 %v39
    %v140 = vunpack.c.l.b16 %v40
    %v141 = vunpack.c.h.b16 %v40
    %v142 = vunpack.c.l.b16 %v41
    %v143 = vunpack.c.h.b16 %v41
    %v144 = vunpack.c.l.b16 %v42
    %v145 = vunpack.c.h.b16 %v42
    %v146 = vunpack.c.l.b16 %v43
    %v147 = vunpack.c.h.b16 %v43
    %v148 = vunpack.c.l.b16 %v44
    %v149 = vunpack.c.h.b16 %v44
    %v150 = vunpack.c.l.b16 %v45
    %v151 = vunpack.c.h.b16 %v45
    %v152 = vunpack.c.l.b16 %v46
    %v153 = vunpack.c.h.b16 %v46
    %v154 = vunpack.c.l.b16 %v47
    %v155 = vunpack.c.h.b16 %v47
    %v156 = vunpack.c.l.b16 %v48
    %v157 = vunpack.c.h.b16 %v48
    %v158 = vunpack.c.l.b16 %v49
    %v159 = vunpack.c.h.b16 %v49
    %v160 = vunpack.c.l.b16 %v50
    %v161 = vunpack.c.h.b16 %v50
    %v162 = vunpack.c.l.b16 %v51
    %v163 = vunpack.c.h.b16 %v51
    %v164 = vunpack.c.l.b16 %v52
    %v165 = vunpack.c.h.b16 %v52
    %v166 = vunpack.c.l.b16 %v53
    %v167 = vunpack.c.h.b16 %v53
    %v168 = vunpack.c.l.b16 %v54
    %v169 = vunpack.c.h.b16 %v54
    %v170 = vunpack.c.l.b16 %v55
    %v171 = vunpack.c.h.b16 %v55
    %v172 = vunpack.c.l.b16 %v56
    %v173 = vunpack.c.h.b16 %v56
    %v174 = vunpack.c.l.b16 %v57
    %v175 = vunpack.c.h.b16 %v57
    %v176 = vunpack.c.l.b16 %v58
    %v177 = vunpack.c.h.b16 %v58
    %v178 = vunpack.c.l.b16 %v59
    %v179 = vunpack.c.h.b16 %v59
    %v180 = vunpack.c.l.b16 %v60
    %v181 = vunpack.c.h.b16 %v60
    %v182 = vpack.c.b16 %v120, %v118
    %v183 = vpack.c.b16 %v121, %v119
    %v184 = vpack.c.b16 %v124, %v122
    %v185 = vpack.c.b16 %v125, %v123
    %v186 = vpack.c.b16 %v128, %v126
    %v187 = vpack.c.b16 %v129, %v127
    %v188 = vpack.c.b16 %v132, %v130
    %v189 = vpack.c.b16 %v133, %v131
    %v190 = vpack.c.b16 %v136, %v134
    %v191 = vpack.c.b16 %v137, %v135
    %v192 = vpack.c.b16 %v140, %v138
    %v193 = vpack.c.b16 %v141, %v139
    %v194 = vpack.c.b16 %v144, %v142
    %v195 = vpack.c.b16 %v145, %v143
    %v196 = vpack.c.b16 %v148, %v146
    %v197 = vpack.c.b16 %v149, %v147
    %v198 = vpack.c.b16 %v152, %v150
    %v199 = vpack.c.b16 %v153, %v151
    %v200 = vpack.c.b16 %v156, %v154
    %v201 = vpack.c.b16 %v157, %v155
    %v202 = vpack.c.b16 %v160, %v158
    %v203 = vpack.c.b16 %v161, %v159
    %v204 = vpack.c.b16 %v164, %v162
    %v205 = vpack.c.b16 %v165, %v163
    %v206 = vpack.c.b16 %v168, %v166
    %v207 = vpack.c.b16 %v169, %v167
    %v208 = vpack.c.b16 %v172, %v170
    %v209 = vpack.c.b16 %v173, %v171
    %v210 = vpack.c.b16 %v176, %v174
    %v211 = vpack.c.b16 %v177, %v175
    %v212 = vpack.c.b16 %v180, %v178
    %v213 = vpack.c.b16 %v181, %v179
    %246 = vmatprep.subr.bf16.mxu0 %v183
    %247 = vmatpush1.bf16.msra.mxu0 %v182
    %248 = vmatprep.subr.bf16.mxu0 %v185
    %249 = vmatpush1.bf16.msra.mxu0 %v184
    %250 = vmatprep.subr.bf16.mxu0 %v187
    %251 = vmatpush1.bf16.msra.mxu0 %v186
    %252 = vmatprep.subr.bf16.mxu0 %v189
    %253 = vmatpush1.bf16.msra.mxu0 %v188
    %254 = vmatprep.subr.bf16.mxu0 %v191
    %255 = vmatpush1.bf16.msra.mxu0 %v190
    %256 = vmatprep.subr.bf16.mxu0 %v193
    %257 = vmatpush1.bf16.msra.mxu0 %v192
    %258 = vmatprep.subr.bf16.mxu0 %v195
    %259 = vmatpush1.bf16.msra.mxu0 %v194
    %260 = vmatprep.subr.bf16.mxu0 %v197
    %261 = vmatpush1.bf16.msra.mxu0 %v196
    %262 = vmatprep.subr.bf16.mxu0 %v199
    %263 = vmatpush1.bf16.msra.mxu0 %v198
    %264 = vmatprep.subr.bf16.mxu0 %v201
    %265 = vmatpush1.bf16.msra.mxu0 %v200
    %266 = vmatprep.subr.bf16.mxu0 %v203
    %267 = vmatpush1.bf16.msra.mxu0 %v202
    %268 = vmatprep.subr.bf16.mxu0 %v205
    %269 = vmatpush1.bf16.msra.mxu0 %v204
    %270 = vmatprep.subr.bf16.mxu0 %v207
    %271 = vmatpush1.bf16.msra.mxu0 %v206
    %272 = vmatprep.subr.bf16.mxu0 %v209
    %273 = vmatpush1.bf16.msra.mxu0 %v208
    %274 = vmatprep.subr.bf16.mxu0 %v211
    %275 = vmatpush1.bf16.msra.mxu0 %v210
    %276 = vmatprep.subr.bf16.mxu0 %v213
    %277 = vmatpush1.bf16.msra.mxu0 %v212
    %278 = vmatprep.mubr.bf16.mxu0 %v83
    %279 = vmatmul.mubr.bf16.gmra.mrb[0].mxu0 %v76
    %v280 = vpop.f32.mrb[0].mxu0
    %v281 = vadd.f32 0.0, %v280
    %v282 = vpop.f32.mrb[0].mxu0
    %v283 = vadd.f32 0.0, %v282
    %v284 = vpop.f32.mrb[0].mxu0
    %v285 = vpop.f32.mrb[0].mxu0
    %286 = vdwg.mxu0
    %v287 = vld [vmem:[%s2] sm:$0x1]
    %v289 = vlaneseq
    %v290 = vshrl.u32 %v289, 7
    %v291 = vsub.s32 0, %v290
    %v292 = vrot.slane %v287, %v291
    %v294 = vadd.f32 %v281, %v292
    %v295 = vmax.f32 %v294, 0.0
    %v296 = vpack.c.bf16 %v295, %v295
    %v297 = vld [vmem:[%s3] sm:$0xf]
    %v298 = vld [vmem:[%s3 + $0x4] sm:$0xf]
    %v299 = vld [vmem:[%s3 + $0x8] sm:$0xf]
    %v300 = vld [vmem:[%s3 + $0xc] sm:$0xf]
    %v301 = vld [vmem:[%s3 + $0x10] sm:$0xf]
    %v302 = vld [vmem:[%s3 + $0x14] sm:$0xf]
    %v303 = vld [vmem:[%s3 + $0x18] sm:$0xf]
    %v304 = vld [vmem:[%s3 + $0x1c] sm:$0xf]
    %v305 = vld [vmem:[%s3 + $0x20] sm:$0xf]
    %v306 = vld [vmem:[%s3 + $0x24] sm:$0xf]
    %v307 = vld [vmem:[%s3 + $0x28] sm:$0xf]
    %v308 = vld [vmem:[%s3 + $0x2c] sm:$0xf]
    %v309 = vld [vmem:[%s3 + $0x30] sm:$0xf]
    %v310 = vld [vmem:[%s3 + $0x34] sm:$0xf]
    %v311 = vld [vmem:[%s3 + $0x38] sm:$0xf]
    %v312 = vld [vmem:[%s3 + $0x3c] sm:$0xf]
    %v313 = vld [vmem:[%s4] sm:$0x1]
    %v315 = vlaneseq
    %v316 = vshrl.u32 %v315, 7
    %v317 = vsub.s32 0, %v316
    %v318 = vrot.slane %v313, %v317
    %v336 = vunpack.c.l.b16 %v297
    %v337 = vunpack.c.l.b16 %v298
    %v338 = vunpack.c.l.b16 %v299
    %v339 = vunpack.c.l.b16 %v300
    %v340 = vunpack.c.l.b16 %v301
    %v341 = vunpack.c.l.b16 %v302
    %v342 = vunpack.c.l.b16 %v303
    %v343 = vunpack.c.l.b16 %v304
    %v344 = vunpack.c.l.b16 %v305
    %v345 = vunpack.c.l.b16 %v306
    %v346 = vunpack.c.l.b16 %v307
    %v347 = vunpack.c.l.b16 %v308
    %v348 = vunpack.c.l.b16 %v309
    %v349 = vunpack.c.l.b16 %v310
    %v350 = vunpack.c.l.b16 %v311
    %v351 = vunpack.c.l.b16 %v312
    %v352 = vpack.c.b16 %v337, %v336
    %v353 = vpack.c.b16 %v339, %v338
    %v354 = vpack.c.b16 %v341, %v340
    %v355 = vpack.c.b16 %v343, %v342
    %v356 = vpack.c.b16 %v345, %v344
    %v357 = vpack.c.b16 %v347, %v346
    %v358 = vpack.c.b16 %v349, %v348
    %v359 = vpack.c.b16 %v351, %v350
    %368 = vmatprep.subr.bf16.mxu0 0
    %369 = vmatpush1.bf16.msra.mxu0 %v352
    %370 = vmatprep.subr.bf16.mxu0 0
    %371 = vmatpush1.bf16.msra.mxu0 %v353
    %372 = vmatprep.subr.bf16.mxu0 0
    %373 = vmatpush1.bf16.msra.mxu0 %v354
    %374 = vmatprep.subr.bf16.mxu0 0
    %375 = vmatpush1.bf16.msra.mxu0 %v355
    %376 = vmatprep.subr.bf16.mxu0 0
    %377 = vmatpush1.bf16.msra.mxu0 %v356
    %378 = vmatprep.subr.bf16.mxu0 0
    %379 = vmatpush1.bf16.msra.mxu0 %v357
    %380 = vmatprep.subr.bf16.mxu0 0
    %381 = vmatpush1.bf16.msra.mxu0 %v358
    %382 = vmatprep.subr.bf16.mxu0 0
    %383 = vmatpush1.bf16.msra.mxu0 %v359
    %384 = vmatprep.subr.bf16.mxu0 0
    %385 = vmatpush1.bf16.msra.mxu0 0
    %386 = vmatprep.subr.bf16.mxu0 0
    %387 = vmatpush1.bf16.msra.mxu0 0
    %388 = vmatprep.subr.bf16.mxu0 0
    %389 = vmatpush1.bf16.msra.mxu0 0
    %390 = vmatprep.subr.bf16.mxu0 0
    %391 = vmatpush1.bf16.msra.mxu0 0
    %392 = vmatprep.subr.bf16.mxu0 0
    %393 = vmatpush1.bf16.msra.mxu0 0
    %394 = vmatprep.subr.bf16.mxu0 0
    %395 = vmatpush1.bf16.msra.mxu0 0
    %396 = vmatprep.subr.bf16.mxu0 0
    %397 = vmatpush1.bf16.msra.mxu0 0
    %398 = vmatprep.subr.bf16.mxu0 0
    %399 = vmatpush1.bf16.msra.mxu0 0
    %400 = vmatprep.mubr.bf16.mxu0 0
    %401 = vmatmul.mubr.bf16.gmra.mrb[0].mxu0 %v296
    %v402 = vpop.f32.mrb[0].mxu0
    %v403 = vadd.f32 %v318, %v402
    %v404 = vpop.f32.mrb[0].mxu0
    %v405 = vpop.f32.mrb[0].mxu0
    %v406 = vpop.f32.mrb[0].mxu0
    %407 = vdwg.mxu0
    %v408 = vmax.f32 %v403, 0.0
    %v409 = vpack.c.bf16 %v408, %v408
    %v410 = vld [vmem:[%s5] sm:$0xf]
    %v411 = vld [vmem:[%s5 + $0x4] sm:$0xf]
    %v412 = vld [vmem:[%s5 + $0x8] sm:$0xf]
    %v413 = vld [vmem:[%s5 + $0xc] sm:$0xf]
    %v418 = vunpack.c.l.b16 %v410
    %v419 = vunpack.c.l.b16 %v411
    %v420 = vunpack.c.l.b16 %v412
    %v421 = vunpack.c.l.b16 %v413
    %v422 = vpack.c.b16 %v419, %v418
    %v423 = vpack.c.b16 %v421, %v420
    %vm426 = vcmask 261120
    %v428 = vsel %vm426, %v409, 0
    %430 = vmatprep.subr.bf16.mxu0 0
    %431 = vmatpush1.bf16.msra.mxu0 %v422
    %432 = vmatprep.subr.bf16.mxu0 0
    %433 = vmatpush1.bf16.msra.mxu0 %v423
    %434 = vmatprep.subr.bf16.mxu0 0
    %435 = vmatpush1.bf16.msra.mxu0 0
    %436 = vmatprep.subr.bf16.mxu0 0
    %437 = vmatpush1.bf16.msra.mxu0 0
    %438 = vmatprep.subr.bf16.mxu0 0
    %439 = vmatpush1.bf16.msra.mxu0 0
    %440 = vmatprep.subr.bf16.mxu0 0
    %441 = vmatpush1.bf16.msra.mxu0 0
    %442 = vmatprep.subr.bf16.mxu0 0
    %443 = vmatpush1.bf16.msra.mxu0 0
    %444 = vmatprep.subr.bf16.mxu0 0
    %445 = vmatpush1.bf16.msra.mxu0 0
    %446 = vmatprep.subr.bf16.mxu0 0
    %447 = vmatpush1.bf16.msra.mxu0 0
    %448 = vmatprep.subr.bf16.mxu0 0
    %449 = vmatpush1.bf16.msra.mxu0 0
    %450 = vmatprep.subr.bf16.mxu0 0
    %451 = vmatpush1.bf16.msra.mxu0 0
    %452 = vmatprep.subr.bf16.mxu0 0
    %453 = vmatpush1.bf16.msra.mxu0 0
    %454 = vmatprep.subr.bf16.mxu0 0
    %455 = vmatpush1.bf16.msra.mxu0 0
    %456 = vmatprep.subr.bf16.mxu0 0
    %457 = vmatpush1.bf16.msra.mxu0 0
    %458 = vmatprep.subr.bf16.mxu0 0
    %459 = vmatpush1.bf16.msra.mxu0 0
    %460 = vmatprep.subr.bf16.mxu0 0
    %461 = vmatpush1.bf16.msra.mxu0 0
    %462 = vmatprep.mubr.bf16.mxu0 0
    %463 = vmatmul.mubr.bf16.gmra.mrb[0].mxu0 %v428
    %v464 = vpop.f32.mrb[0].mxu0
    %v465 = vadd.f32 %v283, %v464
    %v466 = vpop.f32.mrb[0].mxu0
    %v467 = vpop.f32.mrb[0].mxu0
    %v468 = vpop.f32.mrb[0].mxu0
    %469 = vdwg.mxu0
    %v470 = vld [vmem:[%s6] sm:$0x1]
    %v472 = vlaneseq
    %v473 = vshrl.u32 %v472, 7
    %v474 = vsub.s32 0, %v473
    %v475 = vrot.slane %v470, %v474
    %v477 = vadd.f32 %v465, %v475
    %vm478 = vcmask 254976
    %479 = vst.msk [vmem:[#allocation2] sm:$0x3] %vm478, %v477
    // Predicated region
    $region30: #{tpu_custom_call.1} parent=1 // pred_check
      _
    $region31: #{tpu_custom_call.1} parent=1 // pred_check_branch
      %481 = sbr.rel (0) target = $region33
    $region32: #{tpu_custom_call.1} parent=1 // pred_region
      %s483 = ssub.s32 32, 32
      %484 = vsyncadd [#allocation3], %s483
      %s486 = sshll.u32 [#allocation2], 4
      %s487 = int_to_ptr.vmem [resolvable:$true] %s486
      %489 = dma.vmem_to_hbm [thread:$0]  %s487, 32, %s7, [#allocation3]
    $region33: #{tpu_custom_call.1} parent=1 // pred_fallthru
      _
    // Predicated region
    $region34: #{tpu_custom_call.1} parent=1 // pred_check
      _
    $region35: #{tpu_custom_call.1} parent=1 // pred_check_branch
      %491 = sbr.rel (0) target = $region37
    $region36: #{tpu_custom_call.1} parent=1 // pred_region
      %492 = dma.done [#allocation3], 32
    $region37: #{tpu_custom_call.1} parent=1 // pred_fallthru
      _
    %493 = vsyncpa [#allocation3], 1

</llo_original>
